<compile_context>
chip_gen: v6e
topology: v6e:2x2x1
jax: 0.10.0
libtpu: 0.0.40
codegen_flags: <defaults>
</compile_context>

<pallas_src>
import math

import jax
import jax.numpy as jnp
from jax.experimental import pallas as pl
from jax.experimental.pallas import tpu as pltpu


def _round_up(x, m):
    return ((x + m - 1) // m) * m


# ---------------------------------------------------------------------------
# Pallas kernel (feature-major / lane-dense):  o[:, tile] = W @ rrwp[:, tile]
# The big E = N*N edge axis sits on the 128-lane axis -> unmasked full-lane
# vector stores. Compute (tiny MXU matmul + cast) is fully hidden under the
# tile DMA: the kernel is HBM-bandwidth bound.
# ---------------------------------------------------------------------------
def _rrwp_edge_encoder_kernel(w_ref, pe_ref, o_ref):
    o_ref[...] = jnp.dot(
        w_ref[...], pe_ref[...], preferred_element_type=jnp.float32
    ).astype(o_ref.dtype)


def rrwp_linear_edge_encoder(rrwp_t, weight_t, *, tile_e):
    """rrwp_t: (emb_pad, E_pad) bf16, weight_t: (out_pad, emb_pad) bf16.
    Returns (out_pad, E_pad) bf16 == weight_t @ rrwp_t."""
    emb_pad, e_pad = rrwp_t.shape
    out_pad = weight_t.shape[0]
    assert e_pad % tile_e == 0  # wrapper pads E up to a multiple of tile_e
    grid = (e_pad // tile_e,)

    return pl.pallas_call(
        _rrwp_edge_encoder_kernel,
        out_shape=jax.ShapeDtypeStruct((out_pad, e_pad), rrwp_t.dtype),
        grid_spec=pltpu.PrefetchScalarGridSpec(
            num_scalar_prefetch=0,
            grid=grid,
            in_specs=[
                pl.BlockSpec((out_pad, emb_pad), lambda i: (0, 0)),  # weight (VMEM-resident)
                pl.BlockSpec((emb_pad, tile_e), lambda i: (0, i)),   # rrwp tile
            ],
            out_specs=pl.BlockSpec((out_pad, tile_e), lambda i: (0, i)),
        ),
        compiler_params=pltpu.CompilerParams(
            dimension_semantics=("parallel",),  # edge-axis grid shards across TCs
        ),
    )(weight_t, rrwp_t)


def _pick_tile_e(E, emb_pad, out_pad, tile_e):
    """Pick the largest lane tile that (a) does not exceed the requested tile_e,
    (b) keeps the double-buffered VMEM footprint under ~12 MiB (safe under
    v5e's 16 MiB default scoped VMEM; v6e/v7x have >= 32 MiB defaults), and
    (c) leaves >= 2 grid steps when possible for megacore sharding."""
    bytes_per_col = 2 * 2 * (emb_pad + out_pad)          # double-buffered, bf16
    vmem_cap = max(512, ((12 << 20) // bytes_per_col) // 512 * 512)
    t = min(tile_e, _round_up(E, 512), vmem_cap)
    if _round_up(E, t) == t and t >= 1024:               # keep at least 2 tiles
        t //= 2
    return t


# ---------------------------------------------------------------------------
# JAX glue: sparse (index, val) -> dense, feature-major (dim_pad, E_pad).
# Equivalent to coalesce('add') + pad_to_full_graph + self-loop fill=0.
# Duplicate edges accumulate in f32 (matches the torch fp32 coalesce), then
# the dense tensor is cast to bf16 for the bandwidth-bound kernel stream.
# ---------------------------------------------------------------------------
def sparse_to_dense_cols(index, val, num_nodes, dim_pad, e_pad, dtype=jnp.bfloat16):
    dim = val.shape[1]
    flat = index[0] * num_nodes + index[1]                # edge r = src*N + dst
    dense = jnp.zeros((dim_pad, e_pad), dtype=jnp.float32)
    dense = dense.at[:dim, flat].add(val.astype(jnp.float32).T)
    return dense.astype(dtype)


def rrwp_linear_edge_encoder_forward(rrwp_index, rrwp_val, edge_index, edge_attr,
                                     weight, num_nodes, *, tile_e=32768):
    """End-to-end dense-equivalent forward.

    Returns (out_t, proj_t, rrwp_t, w_pad, E) where
      proj_t : (out_dim, N*N) bf16  -- kernel output fc(rrwp_dense)
      out_t  : (out_dim, N*N) bf16  -- proj_t coalesce-added with edge_attr
    Column r corresponds to edge (src=r//N, dst=r%N); transpose for (E, out_dim).
    """
    emb_dim = rrwp_val.shape[1]
    out_dim = weight.shape[0]
    E = num_nodes * num_nodes

    emb_pad = _round_up(emb_dim, 16)          # bf16 (16, 128) sublane packing
    out_pad = _round_up(out_dim, 16)
    t = _pick_tile_e(E, emb_pad, out_pad, tile_e)
    e_pad = _round_up(E, t)

    rrwp_t = sparse_to_dense_cols(rrwp_index, rrwp_val, num_nodes, emb_pad, e_pad)

    # torch Linear weight layout is (out_dim, in_dim) -- used directly.
    w_pad = jnp.zeros((out_pad, emb_pad), dtype=jnp.bfloat16)
    w_pad = w_pad.at[:out_dim, :emb_dim].set(weight.astype(jnp.bfloat16))

    proj_full = rrwp_linear_edge_encoder(rrwp_t, w_pad, tile_e=t)
    proj_t = proj_full[:out_dim, :E]

    # coalesce('add') of the pre-existing (edge_index, edge_attr) as a sparse
    # post-pass; no dense edge_attr tensor is built or streamed through the
    # kernel.  (Add rounds to bf16, matching the kernel's output dtype.)
    if edge_attr is not None:
        flat_e = edge_index[0] * num_nodes + edge_index[1]
        out_t = proj_t.at[:, flat_e].add(edge_attr.T.astype(proj_t.dtype))
    else:
        out_t = proj_t
    return out_t, proj_t, rrwp_t, w_pad, E


# ---------------------------------------------------------------------------
# Parameter init (deterministic): xavier_uniform for fc.weight, no bias.
# ---------------------------------------------------------------------------
def xavier_uniform(key, fan_in, fan_out, dtype=jnp.float32):
    bound = math.sqrt(6.0 / (fan_in + fan_out))
    return jax.random.uniform(key, (fan_out, fan_in), dtype=dtype,
                              minval=-bound, maxval=bound)


if __name__ == "__main__":
    key = jax.random.PRNGKey(0)
    k_w, k_pe_idx, k_pe_val, k_e_idx, k_e_attr = jax.random.split(key, 5)

    # Module-consistent small shapes:
    #   ksteps = 7 -> emb_dim = ksteps + 1 = 8 ; out_dim = 32 ; N = 64 nodes
    #   => E = N*N = 4096 full-graph edges; tile picker yields 2 tiles of 2048.
    num_nodes = 64
    emb_dim = 8
    out_dim = 32

    # fc = nn.Linear(emb_dim, out_dim, bias=False), xavier_uniform init.
    weight = xavier_uniform(k_w, emb_dim, out_dim)        # (out_dim, emb_dim)

    # Synthetic sparse RRWP: 192 (possibly duplicated) directed edges.
    n_pe_edges = 192
    rrwp_index = jax.random.randint(k_pe_idx, (2, n_pe_edges), 0, num_nodes,
                                    dtype=jnp.int32)
    rrwp_val = jax.random.normal(k_pe_val, (n_pe_edges, emb_dim), dtype=jnp.float32)

    # Synthetic pre-existing edge_attr (already encoded to out_dim): 96 edges.
    n_edges = 96
    edge_index = jax.random.randint(k_e_idx, (2, n_edges), 0, num_nodes,
                                    dtype=jnp.int32)
    edge_attr = jax.random.normal(k_e_attr, (n_edges, out_dim), dtype=jnp.float32)

    out_t, proj_t, rrwp_t, w_pad, E = rrwp_linear_edge_encoder_forward(
        rrwp_index, rrwp_val, edge_index, edge_attr, weight, num_nodes)
    out_t = jax.block_until_ready(out_t)
    proj_t = jax.block_until_ready(proj_t)

    # Module-equivalent row-major view: out_val[r, :] for edge r = src*N + dst.
    out_val = out_t.T                                      # (N*N, out_dim)
    assert out_val.shape == (num_nodes * num_nodes, out_dim)

    # Reference in plain JAX on the SAME bf16-quantized dense inputs, f32 math.
    ref_proj = (w_pad.astype(jnp.float32) @ rrwp_t.astype(jnp.float32))[:out_dim, :E]
    ref_proj = ref_proj.astype(jnp.bfloat16)
    assert jnp.allclose(proj_t.astype(jnp.float32), ref_proj.astype(jnp.float32),
                        atol=2e-2, rtol=2e-2)

    flat_e = edge_index[0] * num_nodes + edge_index[1]
    ref_out = ref_proj.at[:, flat_e].add(edge_attr.T.astype(jnp.bfloat16))
    assert jnp.allclose(out_t.astype(jnp.float32), ref_out.astype(jnp.float32),
                        atol=2e-2, rtol=2e-2)

    # batch.bias = self.fc.bias -> None (use_bias=False); norm_layer = Identity.
    print("KERNEL_OK")
</pallas_src>

<mosaic_0001>
module attributes {stable_mosaic.version = 11 : i64} {
  func.func @_rrwp_edge_encoder_kernel(%arg0: i32, %arg1: memref<32x16xbf16, #tpu.memory_space<vmem>>, %arg2: memref<16x2048xbf16, #tpu.memory_space<vmem>>, %arg3: memref<32x2048xbf16, #tpu.memory_space<vmem>>) attributes {dimension_semantics = [#tpu.dimension_semantics<parallel>], iteration_bounds = array<i64: 2>, scalar_prefetch = 0 : i64, scratch_operands = 0 : i64, tpu.core_type = #tpu.core_type<tc>, window_params = [{pipeline_mode = #tpu.pipeline_mode<synchronous>, transform_indices = @transform_0, window_bounds = array<i64: 32, 16>}, {transform_indices = @transform_1, window_bounds = array<i64: 16, 2048>}, {transform_indices = @transform_2, window_bounds = array<i64: 32, 2048>}]} {
    %c0 = arith.constant 0 : index
    %c0_0 = arith.constant 0 : index
    %0 = vector.load %arg1[%c0, %c0_0] : memref<32x16xbf16, #tpu.memory_space<vmem>>, vector<32x16xbf16>
    %c0_1 = arith.constant 0 : index
    %c0_2 = arith.constant 0 : index
    %1 = vector.load %arg2[%c0_1, %c0_2] : memref<16x2048xbf16, #tpu.memory_space<vmem>>, vector<16x2048xbf16>
    %cst = arith.constant dense<0.000000e+00> : vector<32x2048xf32>
    %2 = tpu.matmul %0, %1, %cst {dimension_numbers = #tpu.dot_dimension_numbers<[1], [0], [0], [1], [0, 0, 1, 1], [], []>} : vector<32x16xbf16>, vector<16x2048xbf16>, vector<32x2048xf32> -> vector<32x2048xf32>
    %3 = arith.truncf %2 : vector<32x2048xf32> to vector<32x2048xbf16>
    %c0_3 = arith.constant 0 : index
    %c0_4 = arith.constant 0 : index
    %4 = vector.load %arg3[%c0_3, %c0_4] : memref<32x2048xbf16, #tpu.memory_space<vmem>>, vector<32x2048xbf16>
    tpu.vector_store %arg3[%c0_3, %c0_4], %3 {strides = array<i32>} : memref<32x2048xbf16, #tpu.memory_space<vmem>>, vector<32x2048xbf16>,
    return
  }
  func.func @transform_0(%arg0: i32) -> (i32, i32) {
    %c0_i32 = arith.constant 0 : i32
    %c0_i32_0 = arith.constant 0 : i32
    %c0_i32_1 = arith.constant 0 : i32
    return %c0_i32, %c0_i32_0 : i32, i32
  }
  func.func @transform_1(%arg0: i32) -> (i32, i32) {
    %c0_i32 = arith.constant 0 : i32
    %c0_i32_0 = arith.constant 0 : i32
    return %c0_i32, %arg0 : i32, i32
  }
  func.func @transform_2(%arg0: i32) -> (i32, i32) {
    %c0_i32 = arith.constant 0 : i32
    %c0_i32_0 = arith.constant 0 : i32
    return %c0_i32, %arg0 : i32, i32
  }
}

</mosaic_0001>

<llo_original>
// kernel: tpu_custom_call.1
$region0: #{tpu_custom_call.1}
  #allocation0 [shape = 'u32[]', space=smem, size = 0x4, offset = 0x4, fixed_abs, tag = 'smem constant byte address 0x4 - core index']
  #allocation1 [shape = 'u32[144,128]{1,0:T(1,128)}', space=vmem, size = 0x12000, scoped, tag = 'internal scratch']
  %s0 = inlined_call_operand.vmem [shape: bf16[32,16], index: 0, kind: input, shape index: {}]
  %s1 = inlined_call_operand.hbm [shape: bf16[16,4096], index: 1, kind: input, shape index: {}]
  %s2 = inlined_call_operand.hbm [shape: bf16[32,4096], index: 2, kind: output, shape index: {}]
  %s3 = sld [smem:[#allocation0]]
  $region45: #{tpu_custom_call.1} parent=0
    _
  %s5 = ssub.s32 1, %s3
  %s6 = scalar_select 0, %s5, %s3
  $region1: #{tpu_custom_call.1} parent=0
    #allocation2 [shape = 'u8[131072]{0}', space=vmem, size = 0x20000, scoped, tag = 'input window, operand 1']
    #allocation3 [shape = 's32[2]{0}', space=sflag, size = 0x8, scoped, tag = 'scoped memory for tpu_custom_call.1']
    #allocation4 [shape = 's32[2]{0}', space=sflag, size = 0x8, scoped, tag = 'scoped memory for tpu_custom_call.1']
    #allocation5 [shape = 'u8[262144]{0}', space=vmem, size = 0x40000, scoped, tag = 'output window, operand 0']
    %7 = vsyncpa [#allocation3], 0
    %s8 = scalar_lea.sflag [#allocation3], 1
    %9 = vsyncpa %s8, 0
    %10 = vsyncpa [#allocation4], 0
    %s11 = scalar_lea.sflag [#allocation4], 1
    %12 = vsyncpa %s11, 0
    loop: start=0, step=1, limit=4
    $region2: #{tpu_custom_call.1} parent=1 // loop_pre_header
      _
    $region3: #{tpu_custom_call.1} parent=1 // loop_header
      %s14 = sphi 0, %s18
      %p15 = scmp.ge.s32.totalorder %s14, 4
      %s22 = sphi 0, %s22
      %s24 = sphi 0, %s22
      %s25 = sphi 0, %s24
      %s39 = sphi 0, %s25
      %s45 = sphi 0, %s47
      %s48 = sphi 0, %s45
      %s49 = sphi 0, %s48
      %s65 = sphi 0, %s49
      %s71 = sphi 0, %s73
      %s74 = sphi 0, %s71
      %s75 = sphi 0, %s74
      %s91 = sphi 0, %s75
    $region4: #{tpu_custom_call.1} parent=1 // loop_header_branch
      %17 = sbr.rel (%p15) target = $region8
    $region5: #{tpu_custom_call.1} parent=1 // loop_body
      %s19 = ssub.s32 %s14, 1
      %s20 = ssub.s32 %s14, 2
      %s21 = sadd.s32 %s14, 1
      %s23 = sadd.s32 %s22, 1
      %p26 = scmp.eq.s32.totalorder %s14, 1
      %p27 = scmp.ne.s32.totalorder %s22, %s24
      %p28 = scmp.eq.s32.totalorder %s14, 0
      %p29 = por %p27, %p28
      %p30 = scmp.ne.s32.totalorder %s22, %s24
      %p31 = scmp.eq.s32.totalorder %s19, 1
      %p32 = por %p30, %p31
      %p33 = scmp.ne.s32.totalorder %s24, %s25
      %p34 = scmp.eq.s32.totalorder %s19, 0
      %p35 = por %p33, %p34
      %p36 = scmp.ne.s32.totalorder %s24, %s25
      %p37 = scmp.eq.s32.totalorder %s20, 1
      %p38 = por %p36, %p37
      %p40 = scmp.ne.s32.totalorder %s25, %s39
      %p41 = scmp.eq.s32.totalorder %s20, 0
      %p42 = por %p40, %p41
      %s43 = ssub.s32 %s14, %s21
      %p44 = scmp.eq.s32.totalorder %s43, 0
      %s46 = sadd.s32 %s45, 1
      %s47 = scalar_select %p44, %s45, %s46
      %p50 = pneg %p44
      %p51 = scmp.eq.s32.totalorder %s14, 1
      %p52 = por %p50, %p51
      %p53 = scmp.ne.s32.totalorder %s45, %s48
      %p54 = scmp.eq.s32.totalorder %s14, 0
      %p55 = por %p53, %p54
      %p56 = scmp.ne.s32.totalorder %s45, %s48
      %p57 = scmp.eq.s32.totalorder %s19, 1
      %p58 = por %p56, %p57
      %p59 = scmp.ne.s32.totalorder %s48, %s49
      %p60 = scmp.eq.s32.totalorder %s19, 0
      %p61 = por %p59, %p60
      %p62 = scmp.ne.s32.totalorder %s48, %s49
      %p63 = scmp.eq.s32.totalorder %s20, 1
      %p64 = por %p62, %p63
      %p66 = scmp.ne.s32.totalorder %s49, %s65
      %p67 = scmp.eq.s32.totalorder %s20, 0
      %p68 = por %p66, %p67
      %s69 = ssub.s32 %s14, %s21
      %p70 = scmp.eq.s32.totalorder %s69, 0
      %s72 = sadd.s32 %s71, 1
      %s73 = scalar_select %p70, %s71, %s72
      %p76 = pneg %p70
      %p77 = scmp.eq.s32.totalorder %s14, 1
      %p78 = por %p76, %p77
      %p79 = scmp.ne.s32.totalorder %s71, %s74
      %p80 = scmp.eq.s32.totalorder %s14, 0
      %p81 = por %p79, %p80
      %p82 = scmp.ne.s32.totalorder %s71, %s74
      %p83 = scmp.eq.s32.totalorder %s19, 1
      %p84 = por %p82, %p83
      %p85 = scmp.ne.s32.totalorder %s74, %s75
      %p86 = scmp.eq.s32.totalorder %s19, 0
      %p87 = por %p85, %p86
      %p88 = scmp.ne.s32.totalorder %s74, %s75
      %p89 = scmp.eq.s32.totalorder %s20, 1
      %p90 = por %p88, %p89
      %p92 = scmp.ne.s32.totalorder %s75, %s91
      %p93 = scmp.eq.s32.totalorder %s20, 0
      %p94 = por %p92, %p93
      %p95 = scmp.le.s32.totalorder 1, %s14
      %p96 = scmp.lt.s32.totalorder %s14, 3
      %p97 = pnand %p95, %p96
      %p98 = pneg %p97
      // Predicated region
      $region9: #{tpu_custom_call.1} parent=5 // pred_check
        _
      $region10: #{tpu_custom_call.1} parent=5 // pred_check_branch
        %100 = sbr.rel (%p97) target = $region12
      $region11: #{tpu_custom_call.1} parent=5 // pred_region
        %s101 = ssub.s32 %s14, 1
        // Predicated region
        $region13: #{tpu_custom_call.1} parent=11 // pred_check
          %p102 = pneg %p35
        $region14: #{tpu_custom_call.1} parent=11 // pred_check_branch
          %104 = sbr.rel (%p102) target = $region16
        $region15: #{tpu_custom_call.1} parent=11 // pred_region
          _
        $region16: #{tpu_custom_call.1} parent=11 // pred_fallthru
          _
      $region12: #{tpu_custom_call.1} parent=5 // pred_fallthru
        _
      %p105 = scmp.lt.s32.totalorder %s14, 2
      // Predicated region
      $region17: #{tpu_custom_call.1} parent=5 // pred_check
        %p106 = pneg %p105
      $region18: #{tpu_custom_call.1} parent=5 // pred_check_branch
        %108 = sbr.rel (%p106) target = $region20
      $region19: #{tpu_custom_call.1} parent=5 // pred_region
        // Predicated region
        $region21: #{tpu_custom_call.1} parent=19 // pred_check
          %p109 = pneg %p55
        $region22: #{tpu_custom_call.1} parent=19 // pred_check_branch
          %111 = sbr.rel (%p109) target = $region24
        $region23: #{tpu_custom_call.1} parent=19 // pred_region
          %s112 = sand.u32 %s45, 1
          %s113 = scalar_lea.sflag [#allocation3], %s112
          %s114 = sand.u32 %s45, 1
          %s115 = smul.addr %s114, 128
          %s116 = scalar_lea.vmem [#allocation2], %s115
          %s117 = smul.u32 16, %s14
          %s119 = ssub.s32 2048, 2048
          %120 = vsyncadd %s113, %s119
          %s121 = smul.addr %s117, 64
          %s122 = scalar_lea.hbm %s1, %s121
          %s123 = sshll.u32 %s116, 4
          %s124 = int_to_ptr.vmem [resolvable:$true] %s123
          %129 = dma.hbm_to_vmem [thread:$0]  %s122, 2048, %s124, %s113, 2048, 1024, 64
        $region24: #{tpu_custom_call.1} parent=19 // pred_fallthru
          _
      $region20: #{tpu_custom_call.1} parent=5 // pred_fallthru
        _
      %p130 = scmp.le.s32.totalorder 1, %s14
      %p131 = scmp.lt.s32.totalorder %s14, 3
      %p132 = pnand %p130, %p131
      %p133 = pneg %p132
      // Predicated region
      $region25: #{tpu_custom_call.1} parent=5 // pred_check
        _
      $region26: #{tpu_custom_call.1} parent=5 // pred_check_branch
        %135 = sbr.rel (%p132) target = $region28
      $region27: #{tpu_custom_call.1} parent=5 // pred_region
        %s136 = ssub.s32 %s14, 1
        %s137 = sand.u32 %s48, 1
        %s138 = scalar_lea.sflag [#allocation3], %s137
        %s139 = sand.u32 %s48, 1
        %s140 = smul.addr %s139, 128
        %s141 = scalar_lea.vmem [#allocation2], %s140
        // Predicated region
        $region29: #{tpu_custom_call.1} parent=27 // pred_check
          %p142 = pneg %p61
        $region30: #{tpu_custom_call.1} parent=27 // pred_check_branch
          %144 = sbr.rel (%p142) target = $region32
        $region31: #{tpu_custom_call.1} parent=27 // pred_region
          %145 = dma.done %s138, 2048
        $region32: #{tpu_custom_call.1} parent=27 // pred_fallthru
          _
        %p146 = pneg %p35
        %p147 = pneg %p32
        %s148 = sand.u32 %s48, 1
        %s149 = scalar_lea.sflag [#allocation3], %s148
        %s150 = sand.u32 %s48, 1
        %s151 = smul.addr %s150, 128
        %s152 = scalar_lea.vmem [#allocation2], %s151
        %p153 = pneg %p61
        %p154 = pneg %p58
        %p155 = pneg %p87
        %p156 = pneg %p84
        %s157 = sand.u32 %s74, 1
        %s158 = scalar_lea.sflag [#allocation4], %s157
        %s159 = sand.u32 %s74, 1
        %s160 = smul.addr %s159, 256
        %s161 = scalar_lea.vmem [#allocation5], %s160
        %s162 = smul.u32 16, %s19
        %s163 = smul.u32 16, %s19
        %v165 = vld [vmem:[%s0] sm:$0xf]
        %v166 = vld [vmem:[%s0 + $0x4] sm:$0xf]
        %v167 = vld [vmem:[%s0 + $0x8] sm:$0xf]
        %v168 = vld [vmem:[%s0 + $0xc] sm:$0xf]
        %v169 = vld [vmem:[%s141] sm:$0xff]
        %v170 = vld [vmem:[%s141 + $0x8] sm:$0xff]
        %v171 = vld [vmem:[%s141 + $0x10] sm:$0xff]
        %v172 = vld [vmem:[%s141 + $0x18] sm:$0xff]
        %v173 = vld [vmem:[%s141 + $0x20] sm:$0xff]
        %v174 = vld [vmem:[%s141 + $0x28] sm:$0xff]
        %v175 = vld [vmem:[%s141 + $0x30] sm:$0xff]
        %v176 = vld [vmem:[%s141 + $0x38] sm:$0xff]
        %v177 = vld [vmem:[%s141 + $0x40] sm:$0xff]
        %v178 = vld [vmem:[%s141 + $0x48] sm:$0xff]
        %v179 = vld [vmem:[%s141 + $0x50] sm:$0xff]
        %v180 = vld [vmem:[%s141 + $0x58] sm:$0xff]
        %v181 = vld [vmem:[%s141 + $0x60] sm:$0xff]
        %v182 = vld [vmem:[%s141 + $0x68] sm:$0xff]
        %v183 = vld [vmem:[%s141 + $0x70] sm:$0xff]
        %v184 = vld [vmem:[%s141 + $0x78] sm:$0xff]
        %v189 = vunpack.c.l.b16 %v165
        %v190 = vunpack.c.l.b16 %v166
        %v191 = vunpack.c.l.b16 %v167
        %v192 = vunpack.c.l.b16 %v168
        %v193 = vpack.c.b16 %v190, %v189
        %v194 = vpack.c.b16 %v192, %v191
        %v211 = vunpack.c.l.b16 %v169
        %v212 = vunpack.c.h.b16 %v169
        %v213 = vunpack.c.l.b16 %v170
        %v214 = vunpack.c.h.b16 %v170
        %v215 = vunpack.c.l.b16 %v171
        %v216 = vunpack.c.h.b16 %v171
        %v217 = vunpack.c.l.b16 %v172
        %v218 = vunpack.c.h.b16 %v172
        %v219 = vunpack.c.l.b16 %v173
        %v220 = vunpack.c.h.b16 %v173
        %v221 = vunpack.c.l.b16 %v174
        %v222 = vunpack.c.h.b16 %v174
        %v223 = vunpack.c.l.b16 %v175
        %v224 = vunpack.c.h.b16 %v175
        %v225 = vunpack.c.l.b16 %v176
        %v226 = vunpack.c.h.b16 %v176
        %v227 = vunpack.c.l.b16 %v177
        %v228 = vunpack.c.h.b16 %v177
        %v229 = vunpack.c.l.b16 %v178
        %v230 = vunpack.c.h.b16 %v178
        %v231 = vunpack.c.l.b16 %v179
        %v232 = vunpack.c.h.b16 %v179
        %v233 = vunpack.c.l.b16 %v180
        %v234 = vunpack.c.h.b16 %v180
        %v235 = vunpack.c.l.b16 %v181
        %v236 = vunpack.c.h.b16 %v181
        %v237 = vunpack.c.l.b16 %v182
        %v238 = vunpack.c.h.b16 %v182
        %v239 = vunpack.c.l.b16 %v183
        %v240 = vunpack.c.h.b16 %v183
        %v241 = vunpack.c.l.b16 %v184
        %v242 = vunpack.c.h.b16 %v184
        %v243 = vpack.c.b16 %v227, %v211
        %v244 = vpack.c.b16 %v228, %v212
        %v245 = vpack.c.b16 %v229, %v213
        %v246 = vpack.c.b16 %v230, %v214
        %v247 = vpack.c.b16 %v231, %v215
        %v248 = vpack.c.b16 %v232, %v216
        %v249 = vpack.c.b16 %v233, %v217
        %v250 = vpack.c.b16 %v234, %v218
        %v251 = vpack.c.b16 %v235, %v219
        %v252 = vpack.c.b16 %v236, %v220
        %v253 = vpack.c.b16 %v237, %v221
        %v254 = vpack.c.b16 %v238, %v222
        %v255 = vpack.c.b16 %v239, %v223
        %v256 = vpack.c.b16 %v240, %v224
        %v257 = vpack.c.b16 %v241, %v225
        %v258 = vpack.c.b16 %v242, %v226
        %vm275 = vcmask 130048
        %v277 = vsel %vm275, %v193, 0
        %v280 = vsel %vm275, %v194, 0
        %282 = vmatprep.subr.bf16.mxu0 0
        %283 = vmatpush1.bf16.msra.mxu0 0
        %284 = vmatprep.subr.bf16.mxu0 0
        %285 = vmatpush1.bf16.msra.mxu0 0
        %286 = vmatprep.subr.bf16.mxu0 0
        %287 = vmatpush1.bf16.msra.mxu0 0
        %288 = vmatprep.subr.bf16.mxu0 0
        %289 = vmatpush1.bf16.msra.mxu0 0
        %290 = vmatprep.subr.bf16.mxu0 0
        %291 = vmatpush1.bf16.msra.mxu0 0
        %292 = vmatprep.subr.bf16.mxu0 0
        %293 = vmatpush1.bf16.msra.mxu0 0
        %294 = vmatprep.subr.bf16.mxu0 0
        %295 = vmatpush1.bf16.msra.mxu0 0
        %296 = vmatprep.subr.bf16.mxu0 %v244
        %297 = vmatpush1.bf16.msra.mxu0 %v243
        %298 = vmatprep.subr.bf16.mxu0 0
        %299 = vmatpush2.bf16.msra.mxu0 0
        %300 = vmatprep.subr.bf16.mxu0 0
        %301 = vmatpush2.bf16.msra.mxu0 0
        %302 = vmatprep.subr.bf16.mxu0 0
        %303 = vmatpush2.bf16.msra.mxu0 0
        %304 = vmatprep.subr.bf16.mxu0 0
        %305 = vmatpush2.bf16.msra.mxu0 0
        %306 = vmatprep.subr.bf16.mxu0 0
        %307 = vmatpush2.bf16.msra.mxu0 0
        %308 = vmatprep.subr.bf16.mxu0 0
        %309 = vmatpush2.bf16.msra.mxu0 0
        %310 = vmatprep.subr.bf16.mxu0 0
        %311 = vmatpush2.bf16.msra.mxu0 0
        %312 = vmatprep.subr.bf16.mxu0 0
        %313 = vmatpush2.bf16.msra.mxu0 0
        %314 = vmatprep.mubr.bf16.mxu0 0
        %315 = vmatmul.mubr.bf16.gmra.mxu0 %v277
        %v316 = vpop.f32.mrf.mxu0
        %v317 = vadd.f32 0.0, %v316
        %v318 = vpop.f32.mrf.mxu0
        %v319 = vadd.f32 0.0, %v318
        %v320 = vpop.f32.mrf.mxu0
        %v321 = vadd.f32 0.0, %v320
        %v322 = vpop.f32.mrf.mxu0
        %v323 = vadd.f32 0.0, %v322
        %324 = vmatprep.mubr.bf16.mxu0 0
        %325 = vmatmul.mubr.bf16.gmra.mxu0 %v280
        %v326 = vpop.f32.mrf.mxu0
        %v327 = vadd.f32 0.0, %v326
        %v328 = vpop.f32.mrf.mxu0
        %v329 = vadd.f32 0.0, %v328
        %v330 = vpop.f32.mrf.mxu0
        %v331 = vadd.f32 0.0, %v330
        %v332 = vpop.f32.mrf.mxu0
        %v333 = vadd.f32 0.0, %v332
        %334 = vdwg.mxu0
        %335 = vmatprep.subr.bf16.mxu0 0
        %336 = vmatpush1.bf16.msra.mxu0 0
        %337 = vmatprep.subr.bf16.mxu0 0
        %338 = vmatpush1.bf16.msra.mxu0 0
        %339 = vmatprep.subr.bf16.mxu0 0
        %340 = vmatpush1.bf16.msra.mxu0 0
        %341 = vmatprep.subr.bf16.mxu0 0
        %342 = vmatpush1.bf16.msra.mxu0 0
        %343 = vmatprep.subr.bf16.mxu0 0
        %344 = vmatpush1.bf16.msra.mxu0 0
        %345 = vmatprep.subr.bf16.mxu0 0
        %346 = vmatpush1.bf16.msra.mxu0 0
        %347 = vmatprep.subr.bf16.mxu0 0
        %348 = vmatpush1.bf16.msra.mxu0 0
        %349 = vmatprep.subr.bf16.mxu0 %v246
        %350 = vmatpush1.bf16.msra.mxu0 %v245
        %351 = vmatprep.subr.bf16.mxu0 0
        %352 = vmatpush2.bf16.msra.mxu0 0
        %353 = vmatprep.subr.bf16.mxu0 0
        %354 = vmatpush2.bf16.msra.mxu0 0
        %355 = vmatprep.subr.bf16.mxu0 0
        %356 = vmatpush2.bf16.msra.mxu0 0
        %357 = vmatprep.subr.bf16.mxu0 0
        %358 = vmatpush2.bf16.msra.mxu0 0
        %359 = vmatprep.subr.bf16.mxu0 0
        %360 = vmatpush2.bf16.msra.mxu0 0
        %361 = vmatprep.subr.bf16.mxu0 0
        %362 = vmatpush2.bf16.msra.mxu0 0
        %363 = vmatprep.subr.bf16.mxu0 0
        %364 = vmatpush2.bf16.msra.mxu0 0
        %365 = vmatprep.subr.bf16.mxu0 0
        %366 = vmatpush2.bf16.msra.mxu0 0
        %367 = vmatprep.mubr.bf16.mxu0 0
        %368 = vmatmul.mubr.bf16.gmra.mxu0 %v277
        %v369 = vpop.f32.mrf.mxu0
        %v370 = vadd.f32 0.0, %v369
        %v371 = vpop.f32.mrf.mxu0
        %v372 = vadd.f32 0.0, %v371
        %v373 = vpop.f32.mrf.mxu0
        %v374 = vadd.f32 0.0, %v373
        %v375 = vpop.f32.mrf.mxu0
        %v376 = vadd.f32 0.0, %v375
        %377 = vmatprep.mubr.bf16.mxu0 0
        %378 = vmatmul.mubr.bf16.gmra.mxu0 %v280
        %v379 = vpop.f32.mrf.mxu0
        %v380 = vadd.f32 0.0, %v379
        %v381 = vpop.f32.mrf.mxu0
        %v382 = vadd.f32 0.0, %v381
        %v383 = vpop.f32.mrf.mxu0
        %v384 = vadd.f32 0.0, %v383
        %v385 = vpop.f32.mrf.mxu0
        %v386 = vadd.f32 0.0, %v385
        %387 = vdwg.mxu0
        %388 = vmatprep.subr.bf16.mxu0 0
        %389 = vmatpush1.bf16.msra.mxu0 0
        %390 = vmatprep.subr.bf16.mxu0 0
        %391 = vmatpush1.bf16.msra.mxu0 0
        %392 = vmatprep.subr.bf16.mxu0 0
        %393 = vmatpush1.bf16.msra.mxu0 0
        %394 = vmatprep.subr.bf16.mxu0 0
        %395 = vmatpush1.bf16.msra.mxu0 0
        %396 = vmatprep.subr.bf16.mxu0 0
        %397 = vmatpush1.bf16.msra.mxu0 0
        %398 = vmatprep.subr.bf16.mxu0 0
        %399 = vmatpush1.bf16.msra.mxu0 0
        %400 = vmatprep.subr.bf16.mxu0 0
        %401 = vmatpush1.bf16.msra.mxu0 0
        %402 = vmatprep.subr.bf16.mxu0 %v248
        %403 = vmatpush1.bf16.msra.mxu0 %v247
        %404 = vmatprep.subr.bf16.mxu0 0
        %405 = vmatpush2.bf16.msra.mxu0 0
        %406 = vmatprep.subr.bf16.mxu0 0
        %407 = vmatpush2.bf16.msra.mxu0 0
        %408 = vmatprep.subr.bf16.mxu0 0
        %409 = vmatpush2.bf16.msra.mxu0 0
        %410 = vmatprep.subr.bf16.mxu0 0
        %411 = vmatpush2.bf16.msra.mxu0 0
        %412 = vmatprep.subr.bf16.mxu0 0
        %413 = vmatpush2.bf16.msra.mxu0 0
        %414 = vmatprep.subr.bf16.mxu0 0
        %415 = vmatpush2.bf16.msra.mxu0 0
        %416 = vmatprep.subr.bf16.mxu0 0
        %417 = vmatpush2.bf16.msra.mxu0 0
        %418 = vmatprep.subr.bf16.mxu0 0
        %419 = vmatpush2.bf16.msra.mxu0 0
        %420 = vmatprep.mubr.bf16.mxu0 0
        %421 = vmatmul.mubr.bf16.gmra.mxu0 %v277
        %v422 = vpop.f32.mrf.mxu0
        %v423 = vadd.f32 0.0, %v422
        %v424 = vpop.f32.mrf.mxu0
        %v425 = vadd.f32 0.0, %v424
        %v426 = vpop.f32.mrf.mxu0
        %v427 = vadd.f32 0.0, %v426
        %v428 = vpop.f32.mrf.mxu0
        %v429 = vadd.f32 0.0, %v428
        %430 = vmatprep.mubr.bf16.mxu0 0
        %431 = vmatmul.mubr.bf16.gmra.mxu0 %v280
        %v432 = vpop.f32.mrf.mxu0
        %v433 = vadd.f32 0.0, %v432
        %v434 = vpop.f32.mrf.mxu0
        %v435 = vadd.f32 0.0, %v434
        %v436 = vpop.f32.mrf.mxu0
        %v437 = vadd.f32 0.0, %v436
        %v438 = vpop.f32.mrf.mxu0
        %v439 = vadd.f32 0.0, %v438
        %440 = vdwg.mxu0
        %441 = vmatprep.subr.bf16.mxu0 0
        %442 = vmatpush1.bf16.msra.mxu0 0
        %443 = vmatprep.subr.bf16.mxu0 0
        %444 = vmatpush1.bf16.msra.mxu0 0
        %445 = vmatprep.subr.bf16.mxu0 0
        %446 = vmatpush1.bf16.msra.mxu0 0
        %447 = vmatprep.subr.bf16.mxu0 0
        %448 = vmatpush1.bf16.msra.mxu0 0
        %449 = vmatprep.subr.bf16.mxu0 0
        %450 = vmatpush1.bf16.msra.mxu0 0
        %451 = vmatprep.subr.bf16.mxu0 0
        %452 = vmatpush1.bf16.msra.mxu0 0
        %453 = vmatprep.subr.bf16.mxu0 0
        %454 = vmatpush1.bf16.msra.mxu0 0
        %455 = vmatprep.subr.bf16.mxu0 %v250
        %456 = vmatpush1.bf16.msra.mxu0 %v249
        %457 = vmatprep.subr.bf16.mxu0 0
        %458 = vmatpush2.bf16.msra.mxu0 0
        %459 = vmatprep.subr.bf16.mxu0 0
        %460 = vmatpush2.bf16.msra.mxu0 0
        %461 = vmatprep.subr.bf16.mxu0 0
        %462 = vmatpush2.bf16.msra.mxu0 0
        %463 = vmatprep.subr.bf16.mxu0 0
        %464 = vmatpush2.bf16.msra.mxu0 0
        %465 = vmatprep.subr.bf16.mxu0 0
        %466 = vmatpush2.bf16.msra.mxu0 0
        %467 = vmatprep.subr.bf16.mxu0 0
        %468 = vmatpush2.bf16.msra.mxu0 0
        %469 = vmatprep.subr.bf16.mxu0 0
        %470 = vmatpush2.bf16.msra.mxu0 0
        %471 = vmatprep.subr.bf16.mxu0 0
        %472 = vmatpush2.bf16.msra.mxu0 0
        %473 = vmatprep.mubr.bf16.mxu0 0
        %474 = vmatmul.mubr.bf16.gmra.mxu0 %v277
        %v475 = vpop.f32.mrf.mxu0
        %v476 = vadd.f32 0.0, %v475
        %v477 = vpop.f32.mrf.mxu0
        %v478 = vadd.f32 0.0, %v477
        %v479 = vpop.f32.mrf.mxu0
        %v480 = vadd.f32 0.0, %v479
        %v481 = vpop.f32.mrf.mxu0
        %v482 = vadd.f32 0.0, %v481
        %483 = vmatprep.mubr.bf16.mxu0 0
        %484 = vmatmul.mubr.bf16.gmra.mxu0 %v280
        %v485 = vpop.f32.mrf.mxu0
        %v486 = vadd.f32 0.0, %v485
        %v487 = vpop.f32.mrf.mxu0
        %v488 = vadd.f32 0.0, %v487
        %v489 = vpop.f32.mrf.mxu0
        %v490 = vadd.f32 0.0, %v489
        %v491 = vpop.f32.mrf.mxu0
        %v492 = vadd.f32 0.0, %v491
        %493 = vdwg.mxu0
        %494 = vmatprep.subr.bf16.mxu0 0
        %495 = vmatpush1.bf16.msra.mxu0 0
        %496 = vmatprep.subr.bf16.mxu0 0
        %497 = vmatpush1.bf16.msra.mxu0 0
        %498 = vmatprep.subr.bf16.mxu0 0
        %499 = vmatpush1.bf16.msra.mxu0 0
        %500 = vmatprep.subr.bf16.mxu0 0
        %501 = vmatpush1.bf16.msra.mxu0 0
        %502 = vmatprep.subr.bf16.mxu0 0
        %503 = vmatpush1.bf16.msra.mxu0 0
        %504 = vmatprep.subr.bf16.mxu0 0
        %505 = vmatpush1.bf16.msra.mxu0 0
        %506 = vmatprep.subr.bf16.mxu0 0
        %507 = vmatpush1.bf16.msra.mxu0 0
        %508 = vmatprep.subr.bf16.mxu0 %v252
        %509 = vmatpush1.bf16.msra.mxu0 %v251
        %510 = vmatprep.subr.bf16.mxu0 0
        %511 = vmatpush2.bf16.msra.mxu0 0
        %512 = vmatprep.subr.bf16.mxu0 0
        %513 = vmatpush2.bf16.msra.mxu0 0
        %514 = vmatprep.subr.bf16.mxu0 0
        %515 = vmatpush2.bf16.msra.mxu0 0
        %516 = vmatprep.subr.bf16.mxu0 0
        %517 = vmatpush2.bf16.msra.mxu0 0
        %518 = vmatprep.subr.bf16.mxu0 0
        %519 = vmatpush2.bf16.msra.mxu0 0
        %520 = vmatprep.subr.bf16.mxu0 0
        %521 = vmatpush2.bf16.msra.mxu0 0
        %522 = vmatprep.subr.bf16.mxu0 0
        %523 = vmatpush2.bf16.msra.mxu0 0
        %524 = vmatprep.subr.bf16.mxu0 0
        %525 = vmatpush2.bf16.msra.mxu0 0
        %526 = vmatprep.mubr.bf16.mxu0 0
        %527 = vmatmul.mubr.bf16.gmra.mxu0 %v277
        %v528 = vpop.f32.mrf.mxu0
        %v529 = vadd.f32 0.0, %v528
        %v530 = vpop.f32.mrf.mxu0
        %v531 = vadd.f32 0.0, %v530
        %v532 = vpop.f32.mrf.mxu0
        %v533 = vadd.f32 0.0, %v532
        %v534 = vpop.f32.mrf.mxu0
        %v535 = vadd.f32 0.0, %v534
        %536 = vmatprep.mubr.bf16.mxu0 0
        %537 = vmatmul.mubr.bf16.gmra.mxu0 %v280
        %v538 = vpop.f32.mrf.mxu0
        %v539 = vadd.f32 0.0, %v538
        %v540 = vpop.f32.mrf.mxu0
        %v541 = vadd.f32 0.0, %v540
        %v542 = vpop.f32.mrf.mxu0
        %v543 = vadd.f32 0.0, %v542
        %v544 = vpop.f32.mrf.mxu0
        %v545 = vadd.f32 0.0, %v544
        %546 = vdwg.mxu0
        %547 = vmatprep.subr.bf16.mxu0 0
        %548 = vmatpush1.bf16.msra.mxu0 0
        %549 = vmatprep.subr.bf16.mxu0 0
        %550 = vmatpush1.bf16.msra.mxu0 0
        %551 = vmatprep.subr.bf16.mxu0 0
        %552 = vmatpush1.bf16.msra.mxu0 0
        %553 = vmatprep.subr.bf16.mxu0 0
        %554 = vmatpush1.bf16.msra.mxu0 0
        %555 = vmatprep.subr.bf16.mxu0 0
        %556 = vmatpush1.bf16.msra.mxu0 0
        %557 = vmatprep.subr.bf16.mxu0 0
        %558 = vmatpush1.bf16.msra.mxu0 0
        %559 = vmatprep.subr.bf16.mxu0 0
        %560 = vmatpush1.bf16.msra.mxu0 0
        %561 = vmatprep.subr.bf16.mxu0 %v254
        %562 = vmatpush1.bf16.msra.mxu0 %v253
        %563 = vmatprep.subr.bf16.mxu0 0
        %564 = vmatpush2.bf16.msra.mxu0 0
        %565 = vmatprep.subr.bf16.mxu0 0
        %566 = vmatpush2.bf16.msra.mxu0 0
        %567 = vmatprep.subr.bf16.mxu0 0
        %568 = vmatpush2.bf16.msra.mxu0 0
        %569 = vmatprep.subr.bf16.mxu0 0
        %570 = vmatpush2.bf16.msra.mxu0 0
        %571 = vmatprep.subr.bf16.mxu0 0
        %572 = vmatpush2.bf16.msra.mxu0 0
        %573 = vmatprep.subr.bf16.mxu0 0
        %574 = vmatpush2.bf16.msra.mxu0 0
        %575 = vmatprep.subr.bf16.mxu0 0
        %576 = vmatpush2.bf16.msra.mxu0 0
        %577 = vmatprep.subr.bf16.mxu0 0
        %578 = vmatpush2.bf16.msra.mxu0 0
        %579 = vmatprep.mubr.bf16.mxu0 0
        %580 = vmatmul.mubr.bf16.gmra.mxu0 %v277
        %v581 = vpop.f32.mrf.mxu0
        %v582 = vadd.f32 0.0, %v581
        %v583 = vpop.f32.mrf.mxu0
        %v584 = vadd.f32 0.0, %v583
        %v585 = vpop.f32.mrf.mxu0
        %v586 = vadd.f32 0.0, %v585
        %v587 = vpop.f32.mrf.mxu0
        %v588 = vadd.f32 0.0, %v587
        %589 = vmatprep.mubr.bf16.mxu0 0
        %590 = vmatmul.mubr.bf16.gmra.mxu0 %v280
        %v591 = vpop.f32.mrf.mxu0
        %v592 = vadd.f32 0.0, %v591
        %v593 = vpop.f32.mrf.mxu0
        %v594 = vadd.f32 0.0, %v593
        %v595 = vpop.f32.mrf.mxu0
        %v596 = vadd.f32 0.0, %v595
        %v597 = vpop.f32.mrf.mxu0
        %v598 = vadd.f32 0.0, %v597
        %599 = vdwg.mxu0
        %600 = vmatprep.subr.bf16.mxu0 0
        %601 = vmatpush1.bf16.msra.mxu0 0
        %602 = vmatprep.subr.bf16.mxu0 0
        %603 = vmatpush1.bf16.msra.mxu0 0
        %604 = vmatprep.subr.bf16.mxu0 0
        %605 = vmatpush1.bf16.msra.mxu0 0
        %606 = vmatprep.subr.bf16.mxu0 0
        %607 = vmatpush1.bf16.msra.mxu0 0
        %608 = vmatprep.subr.bf16.mxu0 0
        %609 = vmatpush1.bf16.msra.mxu0 0
        %610 = vmatprep.subr.bf16.mxu0 0
        %611 = vmatpush1.bf16.msra.mxu0 0
        %612 = vmatprep.subr.bf16.mxu0 0
        %613 = vmatpush1.bf16.msra.mxu0 0
        %614 = vmatprep.subr.bf16.mxu0 %v256
        %615 = vmatpush1.bf16.msra.mxu0 %v255
        %616 = vmatprep.subr.bf16.mxu0 0
        %617 = vmatpush2.bf16.msra.mxu0 0
        %618 = vmatprep.subr.bf16.mxu0 0
        %619 = vmatpush2.bf16.msra.mxu0 0
        %620 = vmatprep.subr.bf16.mxu0 0
        %621 = vmatpush2.bf16.msra.mxu0 0
        %622 = vmatprep.subr.bf16.mxu0 0
        %623 = vmatpush2.bf16.msra.mxu0 0
        %624 = vmatprep.subr.bf16.mxu0 0
        %625 = vmatpush2.bf16.msra.mxu0 0
        %626 = vmatprep.subr.bf16.mxu0 0
        %627 = vmatpush2.bf16.msra.mxu0 0
        %628 = vmatprep.subr.bf16.mxu0 0
        %629 = vmatpush2.bf16.msra.mxu0 0
        %630 = vmatprep.subr.bf16.mxu0 0
        %631 = vmatpush2.bf16.msra.mxu0 0
        %632 = vmatprep.mubr.bf16.mxu0 0
        %633 = vmatmul.mubr.bf16.gmra.mxu0 %v277
        %v634 = vpop.f32.mrf.mxu0
        %v635 = vadd.f32 0.0, %v634
        %v636 = vpop.f32.mrf.mxu0
        %v637 = vadd.f32 0.0, %v636
        %v638 = vpop.f32.mrf.mxu0
        %v639 = vadd.f32 0.0, %v638
        %v640 = vpop.f32.mrf.mxu0
        %v641 = vadd.f32 0.0, %v640
        %642 = vmatprep.mubr.bf16.mxu0 0
        %643 = vmatmul.mubr.bf16.gmra.mxu0 %v280
        %v644 = vpop.f32.mrf.mxu0
        %v645 = vadd.f32 0.0, %v644
        %v646 = vpop.f32.mrf.mxu0
        %v647 = vadd.f32 0.0, %v646
        %v648 = vpop.f32.mrf.mxu0
        %v649 = vadd.f32 0.0, %v648
        %v650 = vpop.f32.mrf.mxu0
        %v651 = vadd.f32 0.0, %v650
        %652 = vdwg.mxu0
        %653 = vmatprep.subr.bf16.mxu0 0
        %654 = vmatpush1.bf16.msra.mxu0 0
        %655 = vmatprep.subr.bf16.mxu0 0
        %656 = vmatpush1.bf16.msra.mxu0 0
        %657 = vmatprep.subr.bf16.mxu0 0
        %658 = vmatpush1.bf16.msra.mxu0 0
        %659 = vmatprep.subr.bf16.mxu0 0
        %660 = vmatpush1.bf16.msra.mxu0 0
        %661 = vmatprep.subr.bf16.mxu0 0
        %662 = vmatpush1.bf16.msra.mxu0 0
        %663 = vmatprep.subr.bf16.mxu0 0
        %664 = vmatpush1.bf16.msra.mxu0 0
        %665 = vmatprep.subr.bf16.mxu0 0
        %666 = vmatpush1.bf16.msra.mxu0 0
        %667 = vmatprep.subr.bf16.mxu0 %v258
        %668 = vmatpush1.bf16.msra.mxu0 %v257
        %669 = vmatprep.subr.bf16.mxu0 0
        %670 = vmatpush2.bf16.msra.mxu0 0
        %671 = vmatprep.subr.bf16.mxu0 0
        %672 = vmatpush2.bf16.msra.mxu0 0
        %673 = vmatprep.subr.bf16.mxu0 0
        %674 = vmatpush2.bf16.msra.mxu0 0
        %675 = vmatprep.subr.bf16.mxu0 0
        %676 = vmatpush2.bf16.msra.mxu0 0
        %677 = vmatprep.subr.bf16.mxu0 0
        %678 = vmatpush2.bf16.msra.mxu0 0
        %679 = vmatprep.subr.bf16.mxu0 0
        %680 = vmatpush2.bf16.msra.mxu0 0
        %681 = vmatprep.subr.bf16.mxu0 0
        %682 = vmatpush2.bf16.msra.mxu0 0
        %683 = vmatprep.subr.bf16.mxu0 0
        %684 = vmatpush2.bf16.msra.mxu0 0
        %685 = vmatprep.mubr.bf16.mxu0 0
        %686 = vmatmul.mubr.bf16.gmra.mxu0 %v277
        %v687 = vpop.f32.mrf.mxu0
        %v688 = vadd.f32 0.0, %v687
        %v689 = vpop.f32.mrf.mxu0
        %v690 = vadd.f32 0.0, %v689
        %v691 = vpop.f32.mrf.mxu0
        %v692 = vadd.f32 0.0, %v691
        %v693 = vpop.f32.mrf.mxu0
        %v694 = vadd.f32 0.0, %v693
        %695 = vmatprep.mubr.bf16.mxu0 0
        %696 = vmatmul.mubr.bf16.gmra.mxu0 %v280
        %v697 = vpop.f32.mrf.mxu0
        %v698 = vadd.f32 0.0, %v697
        %v699 = vpop.f32.mrf.mxu0
        %v700 = vadd.f32 0.0, %v699
        %v701 = vpop.f32.mrf.mxu0
        %v702 = vadd.f32 0.0, %v701
        %v703 = vpop.f32.mrf.mxu0
        %v704 = vadd.f32 0.0, %v703
        %705 = vdwg.mxu0
        %v706 = vpack.c.bf16 %v321, %v317
        %v707 = vpack.c.bf16 %v323, %v319
        %v708 = vpack.c.bf16 %v374, %v370
        %v709 = vpack.c.bf16 %v376, %v372
        %v710 = vpack.c.bf16 %v427, %v423
        %v711 = vpack.c.bf16 %v429, %v425
        %v712 = vpack.c.bf16 %v480, %v476
        %v713 = vpack.c.bf16 %v482, %v478
        %v714 = vpack.c.bf16 %v533, %v529
        %v715 = vpack.c.bf16 %v535, %v531
        %v716 = vpack.c.bf16 %v586, %v582
        %v717 = vpack.c.bf16 %v588, %v584
        %v718 = vpack.c.bf16 %v639, %v635
        %v719 = vpack.c.bf16 %v641, %v637
        %v720 = vpack.c.bf16 %v692, %v688
        %v721 = vpack.c.bf16 %v694, %v690
        %v722 = vpack.c.bf16 %v331, %v327
        %v723 = vpack.c.bf16 %v333, %v329
        %v724 = vpack.c.bf16 %v384, %v380
        %v725 = vpack.c.bf16 %v386, %v382
        %v726 = vpack.c.bf16 %v437, %v433
        %v727 = vpack.c.bf16 %v439, %v435
        %v728 = vpack.c.bf16 %v490, %v486
        %v729 = vpack.c.bf16 %v492, %v488
        %v730 = vpack.c.bf16 %v543, %v539
        %v731 = vpack.c.bf16 %v545, %v541
        %v732 = vpack.c.bf16 %v596, %v592
        %v733 = vpack.c.bf16 %v598, %v594
        %v734 = vpack.c.bf16 %v649, %v645
        %v735 = vpack.c.bf16 %v651, %v647
        %v736 = vpack.c.bf16 %v702, %v698
        %v737 = vpack.c.bf16 %v704, %v700
        %v770 = vunpack.c.l.b16 %v706
        %v771 = vunpack.c.l.b16 %v707
        %v772 = vunpack.c.l.b16 %v708
        %v773 = vunpack.c.l.b16 %v709
        %v774 = vunpack.c.l.b16 %v710
        %v775 = vunpack.c.l.b16 %v711
        %v776 = vunpack.c.l.b16 %v712
        %v777 = vunpack.c.l.b16 %v713
        %v778 = vunpack.c.l.b16 %v714
        %v779 = vunpack.c.l.b16 %v715
        %v780 = vunpack.c.l.b16 %v716
        %v781 = vunpack.c.l.b16 %v717
        %v782 = vunpack.c.l.b16 %v718
        %v783 = vunpack.c.l.b16 %v719
        %v784 = vunpack.c.l.b16 %v720
        %v785 = vunpack.c.l.b16 %v721
        %v786 = vunpack.c.h.b16 %v706
        %v787 = vunpack.c.h.b16 %v707
        %v788 = vunpack.c.h.b16 %v708
        %v789 = vunpack.c.h.b16 %v709
        %v790 = vunpack.c.h.b16 %v710
        %v791 = vunpack.c.h.b16 %v711
        %v792 = vunpack.c.h.b16 %v712
        %v793 = vunpack.c.h.b16 %v713
        %v794 = vunpack.c.h.b16 %v714
        %v795 = vunpack.c.h.b16 %v715
        %v796 = vunpack.c.h.b16 %v716
        %v797 = vunpack.c.h.b16 %v717
        %v798 = vunpack.c.h.b16 %v718
        %v799 = vunpack.c.h.b16 %v719
        %v800 = vunpack.c.h.b16 %v720
        %v801 = vunpack.c.h.b16 %v721
        %v802 = vunpack.c.l.b16 %v722
        %v803 = vunpack.c.l.b16 %v723
        %v804 = vunpack.c.l.b16 %v724
        %v805 = vunpack.c.l.b16 %v725
        %v806 = vunpack.c.l.b16 %v726
        %v807 = vunpack.c.l.b16 %v727
        %v808 = vunpack.c.l.b16 %v728
        %v809 = vunpack.c.l.b16 %v729
        %v810 = vunpack.c.l.b16 %v730
        %v811 = vunpack.c.l.b16 %v731
        %v812 = vunpack.c.l.b16 %v732
        %v813 = vunpack.c.l.b16 %v733
        %v814 = vunpack.c.l.b16 %v734
        %v815 = vunpack.c.l.b16 %v735
        %v816 = vunpack.c.l.b16 %v736
        %v817 = vunpack.c.l.b16 %v737
        %v818 = vunpack.c.h.b16 %v722
        %v819 = vunpack.c.h.b16 %v723
        %v820 = vunpack.c.h.b16 %v724
        %v821 = vunpack.c.h.b16 %v725
        %v822 = vunpack.c.h.b16 %v726
        %v823 = vunpack.c.h.b16 %v727
        %v824 = vunpack.c.h.b16 %v728
        %v825 = vunpack.c.h.b16 %v729
        %v826 = vunpack.c.h.b16 %v730
        %v827 = vunpack.c.h.b16 %v731
        %v828 = vunpack.c.h.b16 %v732
        %v829 = vunpack.c.h.b16 %v733
        %v830 = vunpack.c.h.b16 %v734
        %v831 = vunpack.c.h.b16 %v735
        %v832 = vunpack.c.h.b16 %v736
        %v833 = vunpack.c.h.b16 %v737
        %v834 = vpack.c.b16 %v771, %v770
        %v835 = vpack.c.b16 %v773, %v772
        %v836 = vpack.c.b16 %v775, %v774
        %v837 = vpack.c.b16 %v777, %v776
        %v838 = vpack.c.b16 %v779, %v778
        %v839 = vpack.c.b16 %v781, %v780
        %v840 = vpack.c.b16 %v783, %v782
        %v841 = vpack.c.b16 %v785, %v784
        %v842 = vpack.c.b16 %v787, %v786
        %v843 = vpack.c.b16 %v789, %v788
        %v844 = vpack.c.b16 %v791, %v790
        %v845 = vpack.c.b16 %v793, %v792
        %v846 = vpack.c.b16 %v795, %v794
        %v847 = vpack.c.b16 %v797, %v796
        %v848 = vpack.c.b16 %v799, %v798
        %v849 = vpack.c.b16 %v801, %v800
        %v850 = vpack.c.b16 %v803, %v802
        %v851 = vpack.c.b16 %v805, %v804
        %v852 = vpack.c.b16 %v807, %v806
        %v853 = vpack.c.b16 %v809, %v808
        %v854 = vpack.c.b16 %v811, %v810
        %v855 = vpack.c.b16 %v813, %v812
        %v856 = vpack.c.b16 %v815, %v814
        %v857 = vpack.c.b16 %v817, %v816
        %v858 = vpack.c.b16 %v819, %v818
        %v859 = vpack.c.b16 %v821, %v820
        %v860 = vpack.c.b16 %v823, %v822
        %v861 = vpack.c.b16 %v825, %v824
        %v862 = vpack.c.b16 %v827, %v826
        %v863 = vpack.c.b16 %v829, %v828
        %v864 = vpack.c.b16 %v831, %v830
        %v865 = vpack.c.b16 %v833, %v832
        %898 = vst [vmem:[%s161] sm:$0xff] %v834
        %899 = vst [vmem:[%s161 + $0x8] sm:$0xff] %v835
        %900 = vst [vmem:[%s161 + $0x10] sm:$0xff] %v836
        %901 = vst [vmem:[%s161 + $0x18] sm:$0xff] %v837
        %902 = vst [vmem:[%s161 + $0x20] sm:$0xff] %v838
        %903 = vst [vmem:[%s161 + $0x28] sm:$0xff] %v839
        %904 = vst [vmem:[%s161 + $0x30] sm:$0xff] %v840
        %905 = vst [vmem:[%s161 + $0x38] sm:$0xff] %v841
        %906 = vst [vmem:[%s161 + $0x40] sm:$0xff] %v842
        %907 = vst [vmem:[%s161 + $0x48] sm:$0xff] %v843
        %908 = vst [vmem:[%s161 + $0x50] sm:$0xff] %v844
        %909 = vst [vmem:[%s161 + $0x58] sm:$0xff] %v845
        %910 = vst [vmem:[%s161 + $0x60] sm:$0xff] %v846
        %911 = vst [vmem:[%s161 + $0x68] sm:$0xff] %v847
        %912 = vst [vmem:[%s161 + $0x70] sm:$0xff] %v848
        %913 = vst [vmem:[%s161 + $0x78] sm:$0xff] %v849
        %914 = vst [vmem:[%s161 + $0x80] sm:$0xff] %v850
        %915 = vst [vmem:[%s161 + $0x88] sm:$0xff] %v851
        %916 = vst [vmem:[%s161 + $0x90] sm:$0xff] %v852
        %917 = vst [vmem:[%s161 + $0x98] sm:$0xff] %v853
        %918 = vst [vmem:[%s161 + $0xa0] sm:$0xff] %v854
        %919 = vst [vmem:[%s161 + $0xa8] sm:$0xff] %v855
        %920 = vst [vmem:[%s161 + $0xb0] sm:$0xff] %v856
        %921 = vst [vmem:[%s161 + $0xb8] sm:$0xff] %v857
        %922 = vst [vmem:[%s161 + $0xc0] sm:$0xff] %v858
        %923 = vst [vmem:[%s161 + $0xc8] sm:$0xff] %v859
        %924 = vst [vmem:[%s161 + $0xd0] sm:$0xff] %v860
        %925 = vst [vmem:[%s161 + $0xd8] sm:$0xff] %v861
        %926 = vst [vmem:[%s161 + $0xe0] sm:$0xff] %v862
        %927 = vst [vmem:[%s161 + $0xe8] sm:$0xff] %v863
        %928 = vst [vmem:[%s161 + $0xf0] sm:$0xff] %v864
        %929 = vst [vmem:[%s161 + $0xf8] sm:$0xff] %v865
        %s930 = sand.u32 %s74, 1
        %s931 = scalar_lea.sflag [#allocation4], %s930
        %s932 = sand.u32 %s74, 1
        %s933 = smul.addr %s932, 256
        %s934 = scalar_lea.vmem [#allocation5], %s933
        // Predicated region
        $region33: #{tpu_custom_call.1} parent=27 // pred_check
          %p935 = pneg %p84
        $region34: #{tpu_custom_call.1} parent=27 // pred_check_branch
          %937 = sbr.rel (%p935) target = $region36
        $region35: #{tpu_custom_call.1} parent=27 // pred_region
          %s938 = smul.u32 16, %s19
          %s940 = ssub.s32 4096, 4096
          %941 = vsyncadd %s931, %s940
          %s942 = smul.addr %s938, 64
          %s943 = scalar_lea.hbm %s2, %s942
          %s944 = sshll.u32 %s934, 4
          %s945 = int_to_ptr.vmem [resolvable:$true] %s944
          %950 = dma.vmem_to_hbm [thread:$0]  %s945, 4096, %s943, %s931, 1024, 2048, 64
        $region36: #{tpu_custom_call.1} parent=27 // pred_fallthru
          _
      $region28: #{tpu_custom_call.1} parent=5 // pred_fallthru
        _
      %p951 = scmp.le.s32.totalorder 2, %s14
      // Predicated region
      $region37: #{tpu_custom_call.1} parent=5 // pred_check
        %p952 = pneg %p951
      $region38: #{tpu_custom_call.1} parent=5 // pred_check_branch
        %954 = sbr.rel (%p952) target = $region40
      $region39: #{tpu_custom_call.1} parent=5 // pred_region
        %s955 = ssub.s32 %s14, 2
        // Predicated region
        $region41: #{tpu_custom_call.1} parent=39 // pred_check
          %p956 = pneg %p90
        $region42: #{tpu_custom_call.1} parent=39 // pred_check_branch
          %958 = sbr.rel (%p956) target = $region44
        $region43: #{tpu_custom_call.1} parent=39 // pred_region
          %s959 = sand.u32 %s75, 1
          %s960 = scalar_lea.sflag [#allocation4], %s959
          %s961 = sand.u32 %s75, 1
          %s962 = smul.addr %s961, 256
          %s963 = scalar_lea.vmem [#allocation5], %s962
          %964 = dma.done %s960, 4096
        $region44: #{tpu_custom_call.1} parent=39 // pred_fallthru
          _
      $region40: #{tpu_custom_call.1} parent=5 // pred_fallthru
        _
    $region6: #{tpu_custom_call.1} parent=1 // loop_footer
      %s18 = sadd.s32 1, %s14
    $region7: #{tpu_custom_call.1} parent=1 // loop_footer_branch
      %13 = sbr.rel target = $region3
    $region8: #{tpu_custom_call.1} parent=1 // loop_exit
      _
    %965 = vsyncpa [#allocation3], 1
    %s966 = scalar_lea.sflag [#allocation3], 1
    %967 = vsyncpa %s966, 1
    %968 = vsyncpa [#allocation4], 1
    %s969 = scalar_lea.sflag [#allocation4], 1
    %970 = vsyncpa %s969, 1

</llo_original>
